<compile_context>
chip_gen: v6e
topology: v6e:2x2x1
jax: 0.10.0
libtpu: 0.0.40
codegen_flags: <defaults>
</compile_context>

<pallas_src>
import numpy as np
import jax
import jax.numpy as jnp
from jax.experimental import pallas as pl
from jax.experimental.pallas import tpu as pltpu


def _round_up(x, m):
    return ((x + m - 1) // m) * m


def _bce_masked_mean_kernel(coef_ref, x_ref, t_ref, m_ref, o_ref):
    """One (tb, Lp) batch tile: elementwise BCE-with-logits on the VPU/EUP,
    per-(original)-row mean via a block-diagonal matmul on the MXU."""
    x = x_ref[...].astype(jnp.float32)
    t = t_ref[...].astype(jnp.float32)
    m = m_ref[...].astype(jnp.float32)

    # Numerically-stable BCE-with-logits, weighted by the mask:
    #   max(x,0) - x*t + log1p(exp(-|x|))
    loss = (jnp.maximum(x, 0.0) - x * t + jnp.log1p(jnp.exp(-jnp.abs(x)))) * m

    # (tb, Lp) @ (Lp, g) -> (tb, g).  coef is block-diagonal with 1/L entries, so
    # column j is the mean over the FULL length L (== torch .mean(dim=1)) of
    # original row  p*g + j.  Strictly row-independent, so OOB garbage rows of a
    # partial last tile never contaminate valid outputs.
    o_ref[...] = jnp.dot(
        loss,
        coef_ref[...],
        preferred_element_type=jnp.float32,
        precision=jax.lax.Precision.HIGHEST,
    )


def _vmem_budget_and_limit():
    """Generation-aware VMEM working budget + scoped limit (bytes)."""
    phys = 64 * 1024 * 1024                      # conservative default (v7x per-TC VMEM)
    try:
        info = pltpu.get_tpu_info()
        phys = int(getattr(info, "vmem_capacity_bytes", phys))
    except Exception:
        pass
    if phys > 64 * 1024 * 1024:                  # v5e / v6e: 128 MiB physical
        return 48 * 1024 * 1024, 96 * 1024 * 1024
    return 32 * 1024 * 1024, 56 * 1024 * 1024    # v7x-class: 64 MiB per TC


def _choose_tb(Bp, Lp, stream_bytes_per_elem, vmem_budget):
    """Largest packed-row batch tile whose true double-buffered footprint fits."""
    lpad = _round_up(Lp, 128)                    # lane padding of the row length in VMEM
    per_row = (
        2 * lpad * stream_bytes_per_elem         # native-width input blocks, x2 buffers
        + 5 * 4 * lpad                           # f32 temporaries (x, t, m, loss + slack)
        + 2 * 4 * 128                            # f32 output tile (g lanes pad to 128), x2 buffers
    )
    fixed = 2 * _round_up(Lp, 8) * 128 * 4       # coef tile, x2 buffers
    tb = max((vmem_budget - fixed) // per_row, 8)  # TODO(synk): L-tiling fallback if this overflows
    if Bp > 512:
        # keep >= ~4 grid steps so BlockSpec double-buffering overlaps DMA with compute
        tb = min(tb, _round_up(pl.cdiv(Bp, 4), 32))
    if tb >= Bp:
        return int(Bp)                           # single full-batch tile (block dims == array dims)
    tb = max((tb // 32) * 32, 32)                # int8 (32,128) sublane packing, >= 32 rows
    return int(min(tb, Bp))


def sigmoid_bce_loss(inputs, targets, mask):
    """Pallas equivalent of SigmoidBinaryCrossEntropyLoss.forward.

    inputs, targets, mask: (batch, len) arrays in ANY dtype (e.g. bf16 logits,
    int8/bool targets and mask).  The f32 cast happens inside the kernel so HBM
    traffic stays at the native width.  Returns (batch,) float32 row means.
    """
    assert inputs.shape == targets.shape == mask.shape
    B, L = inputs.shape

    # ---- small-L lane repacking: (B, L) -> (Bp, g*L), g original rows per packed row ----
    g = max(1, 128 // L) if L < 128 else 1
    if g > 1 and B % g != 0:
        # Rare for real word2vec batches; pad with zero rows (mask == 0 -> loss 0),
        # sliced off below.  Costs one copy only when B is not a multiple of g.
        pad = _round_up(B, g) - B
        inputs = jnp.pad(inputs, ((0, pad), (0, 0)))
        targets = jnp.pad(targets, ((0, pad), (0, 0)))
        mask = jnp.pad(mask, ((0, pad), (0, 0)))
    Bp = inputs.shape[0] // g
    Lp = g * L
    if g > 1:
        inputs = inputs.reshape(Bp, Lp)          # contiguous row-major reshape: free
        targets = targets.reshape(Bp, Lp)
        mask = mask.reshape(Bp, Lp)

    # Block-diagonal reduction matrix, already scaled by 1/L (mean over the FULL L).
    coef_np = np.zeros((Lp, g), dtype=np.float32)
    for j in range(g):
        coef_np[j * L:(j + 1) * L, j] = 1.0 / float(L)
    coef = jnp.asarray(coef_np)

    stream_bytes = sum(int(a.dtype.itemsize) for a in (inputs, targets, mask))
    vmem_budget, vmem_limit = _vmem_budget_and_limit()
    tb = _choose_tb(Bp, Lp, stream_bytes, vmem_budget)
    nb = pl.cdiv(Bp, tb)

    in_bytes = sum(int(a.size) * a.dtype.itemsize for a in (inputs, targets, mask))
    cost = pl.CostEstimate(
        flops=B * L * (6 + 2 * g),
        transcendentals=2 * B * L,
        bytes_accessed=in_bytes + 4 * B,
    )

    out = pl.pallas_call(
        _bce_masked_mean_kernel,
        out_shape=jax.ShapeDtypeStruct((nb * tb, g), jnp.float32),
        grid_spec=pltpu.PrefetchScalarGridSpec(
            num_scalar_prefetch=0,
            grid=(nb,),
            in_specs=[
                pl.BlockSpec((Lp, g), lambda i: (0, 0)),    # tiny coef, reused every step
                pl.BlockSpec((tb, Lp), lambda i: (i, 0)),
                pl.BlockSpec((tb, Lp), lambda i: (i, 0)),
                pl.BlockSpec((tb, Lp), lambda i: (i, 0)),
            ],
            out_specs=pl.BlockSpec((tb, g), lambda i: (i, 0)),
        ),
        compiler_params=pltpu.CompilerParams(
            # independent batch tiles; on v7x this lets the grid shard across both TCs
            dimension_semantics=("parallel",),
            vmem_limit_bytes=vmem_limit,
        ),
        cost_estimate=cost,
    )(coef, inputs, targets, mask)

    # (nb*tb, g): row p, column j holds the mean of original row p*g + j.
    return out.reshape(-1)[:B]


def _reference(inputs, targets, mask):
    x = inputs.astype(jnp.float32)
    t = targets.astype(jnp.float32)
    m = mask.astype(jnp.float32)
    loss = (jnp.maximum(x, 0.0) - x * t + jnp.log1p(jnp.exp(-jnp.abs(x)))) * m
    return jnp.mean(loss, axis=1)


if __name__ == "__main__":
    key = jax.random.PRNGKey(0)
    k1, k2, k3, k4, k5 = jax.random.split(key, 5)

    # --- Case 1: the exact shapes / mask from word2vec.py --------------------------------
    B, L = 2, 4
    inputs = jax.random.normal(k1, (B, L), dtype=jnp.float32).astype(jnp.bfloat16)
    targets = (jax.random.uniform(k2, (B, L)) > 0.5).astype(jnp.int8)   # 0/1 labels streamed as int8
    mask = jnp.array([[1, 1, 1, 1], [1, 1, 1, 0]], dtype=jnp.int8)

    out = sigmoid_bce_loss(inputs, targets, mask)
    jax.block_until_ready(out)
    ref = _reference(inputs, targets, mask)
    assert out.shape == (B,)
    assert jnp.allclose(out, ref, atol=1e-5, rtol=1e-5), (out, ref)

    # --- Case 2: bigger batch with a padding-style mask (exercises the g=2 lane repack
    #             and an odd B that needs the zero-row pad) -------------------------------
    B2, L2 = 49, 60
    inputs2 = jax.random.normal(k3, (B2, L2), dtype=jnp.bfloat16)
    targets2 = (jax.random.uniform(k4, (B2, L2)) > 0.5).astype(jnp.int8)
    lens = jax.random.randint(k5, (B2, 1), 1, L2 + 1)
    mask2 = (jnp.arange(L2)[None, :] < lens).astype(jnp.int8)

    out2 = sigmoid_bce_loss(inputs2, targets2, mask2)
    jax.block_until_ready(out2)
    ref2 = _reference(inputs2, targets2, mask2)
    assert out2.shape == (B2,)
    assert jnp.allclose(out2, ref2, atol=1e-5, rtol=1e-5), (out2, ref2)

    print("KERNEL_OK")
</pallas_src>

<mosaic_0001>
module attributes {stable_mosaic.version = 11 : i64} {
  func.func @_bce_masked_mean_kernel(%arg0: i32, %arg1: memref<128x32xf32, #tpu.memory_space<vmem>>, %arg2: memref<1x128xbf16, #tpu.memory_space<vmem>>, %arg3: memref<1x128xi8, #tpu.memory_space<vmem>>, %arg4: memref<1x128xi8, #tpu.memory_space<vmem>>, %arg5: memref<1x32xf32, #tpu.memory_space<vmem>>) attributes {dimension_semantics = [#tpu.dimension_semantics<parallel>], iteration_bounds = array<i64: 1>, scalar_prefetch = 0 : i64, scratch_operands = 0 : i64, tpu.core_type = #tpu.core_type<tc>, window_params = [{pipeline_mode = #tpu.pipeline_mode<synchronous>, transform_indices = @transform_0, window_bounds = array<i64: 128, 32>}, {transform_indices = @transform_1, window_bounds = array<i64: 1, 128>}, {transform_indices = @transform_2, window_bounds = array<i64: 1, 128>}, {transform_indices = @transform_3, window_bounds = array<i64: 1, 128>}, {transform_indices = @transform_4, window_bounds = array<i64: 1, 32>}]} {
    %c0 = arith.constant 0 : index
    %c0_0 = arith.constant 0 : index
    %0 = vector.load %arg2[%c0, %c0_0] : memref<1x128xbf16, #tpu.memory_space<vmem>>, vector<1x128xbf16>
    %1 = arith.extf %0 : vector<1x128xbf16> to vector<1x128xf32>
    %c0_1 = arith.constant 0 : index
    %c0_2 = arith.constant 0 : index
    %2 = vector.load %arg3[%c0_1, %c0_2] : memref<1x128xi8, #tpu.memory_space<vmem>>, vector<1x128xi8>
    %3 = arith.sitofp %2 : vector<1x128xi8> to vector<1x128xf32>
    %c0_3 = arith.constant 0 : index
    %c0_4 = arith.constant 0 : index
    %4 = vector.load %arg4[%c0_3, %c0_4] : memref<1x128xi8, #tpu.memory_space<vmem>>, vector<1x128xi8>
    %5 = arith.sitofp %4 : vector<1x128xi8> to vector<1x128xf32>
    %cst = arith.constant 0.000000e+00 : f32
    %6 = vector.broadcast %cst : f32 to vector<1x128xf32>
    %7 = arith.maximumf %1, %6 : vector<1x128xf32>
    %8 = arith.mulf %1, %3 : vector<1x128xf32>
    %9 = arith.subf %7, %8 : vector<1x128xf32>
    %10 = math.absf %1 : vector<1x128xf32>
    %cst_5 = arith.constant 0.000000e+00 : f32
    %11 = vector.broadcast %cst_5 : f32 to vector<1x128xf32>
    %12 = arith.subf %11, %10 : vector<1x128xf32>
    %13 = math.exp %12 : vector<1x128xf32>
    %14 = math.log1p %13 : vector<1x128xf32>
    %15 = arith.addf %9, %14 : vector<1x128xf32>
    %16 = arith.mulf %15, %5 : vector<1x128xf32>
    %c0_6 = arith.constant 0 : index
    %c0_7 = arith.constant 0 : index
    %17 = vector.load %arg1[%c0_6, %c0_7] : memref<128x32xf32, #tpu.memory_space<vmem>>, vector<128x32xf32>
    %cst_8 = arith.constant dense<0.000000e+00> : vector<1x32xf32>
    %18 = tpu.matmul %16, %17, %cst_8 {dimension_numbers = #tpu.dot_dimension_numbers<[1], [0], [0], [1], [0, 0, 1, 1], [], []>, precision = #tpu.contract_precision<fp32>} : vector<1x128xf32>, vector<128x32xf32>, vector<1x32xf32> -> vector<1x32xf32>
    %c0_9 = arith.constant 0 : index
    %c0_10 = arith.constant 0 : index
    %19 = vector.load %arg5[%c0_9, %c0_10] : memref<1x32xf32, #tpu.memory_space<vmem>>, vector<1x32xf32>
    tpu.vector_store %arg5[%c0_9, %c0_10], %18 {strides = array<i32>} : memref<1x32xf32, #tpu.memory_space<vmem>>, vector<1x32xf32>,
    return
  }
  func.func @transform_0(%arg0: i32) -> (i32, i32) {
    %c0_i32 = arith.constant 0 : i32
    %c0_i32_0 = arith.constant 0 : i32
    %c0_i32_1 = arith.constant 0 : i32
    return %c0_i32, %c0_i32_0 : i32, i32
  }
  func.func @transform_1(%arg0: i32) -> (i32, i32) {
    %c0_i32 = arith.constant 0 : i32
    %c0_i32_0 = arith.constant 0 : i32
    return %arg0, %c0_i32 : i32, i32
  }
  func.func @transform_2(%arg0: i32) -> (i32, i32) {
    %c0_i32 = arith.constant 0 : i32
    %c0_i32_0 = arith.constant 0 : i32
    return %arg0, %c0_i32 : i32, i32
  }
  func.func @transform_3(%arg0: i32) -> (i32, i32) {
    %c0_i32 = arith.constant 0 : i32
    %c0_i32_0 = arith.constant 0 : i32
    return %arg0, %c0_i32 : i32, i32
  }
  func.func @transform_4(%arg0: i32) -> (i32, i32) {
    %c0_i32 = arith.constant 0 : i32
    %c0_i32_0 = arith.constant 0 : i32
    return %arg0, %c0_i32 : i32, i32
  }
}

</mosaic_0001>

<llo_original>
// kernel: tpu_custom_call.1
$region0: #{tpu_custom_call.1}
  #allocation0 [shape = 'u32[]', space=smem, size = 0x4, offset = 0x4, fixed_abs, tag = 'smem constant byte address 0x4 - core index']
  #allocation1 [shape = 'u32[144,128]{1,0:T(1,128)}', space=vmem, size = 0x12000, scoped, tag = 'internal scratch']
  %s0 = inlined_call_operand.vmem [shape: f32[128,32], index: 0, kind: input, shape index: {}]
  %s1 = inlined_call_operand.vmem [shape: bf16[1,128], index: 1, kind: input, shape index: {}]
  %s2 = inlined_call_operand.vmem [shape: s8[1,128], index: 2, kind: input, shape index: {}]
  %s3 = inlined_call_operand.vmem [shape: s8[1,128], index: 3, kind: input, shape index: {}]
  %s4 = inlined_call_operand.hbm [shape: f32[1,32], index: 4, kind: output, shape index: {}]
  %s5 = sld [smem:[#allocation0]]
  $region26: #{tpu_custom_call.1} parent=0
    _
  %s7 = ssub.s32 1, %s5
  %s8 = scalar_select 0, %s7, %s5
  $region1: #{tpu_custom_call.1} parent=0
    #allocation2 [shape = 'u8[512]{0}', space=vmem, size = 0x400, scoped, tag = 'output window, operand 0, single buffered']
    #allocation3 [shape = 's32[1]{0}', space=sflag, size = 0x4, scoped, tag = 'scoped memory for tpu_custom_call.1']
    %9 = vsyncpa [#allocation3], 0
    // Predicated region
    $region2: #{tpu_custom_call.1} parent=1 // pred_check
      _
    $region3: #{tpu_custom_call.1} parent=1 // pred_check_branch
      %11 = sbr.rel (0) target = $region5
    $region4: #{tpu_custom_call.1} parent=1 // pred_region
      _
    $region5: #{tpu_custom_call.1} parent=1 // pred_fallthru
      _
    // Predicated region
    $region6: #{tpu_custom_call.1} parent=1 // pred_check
      _
    $region7: #{tpu_custom_call.1} parent=1 // pred_check_branch
      %13 = sbr.rel (0) target = $region9
    $region8: #{tpu_custom_call.1} parent=1 // pred_region
      _
    $region9: #{tpu_custom_call.1} parent=1 // pred_fallthru
      _
    // Predicated region
    $region10: #{tpu_custom_call.1} parent=1 // pred_check
      _
    $region11: #{tpu_custom_call.1} parent=1 // pred_check_branch
      %15 = sbr.rel (0) target = $region13
    $region12: #{tpu_custom_call.1} parent=1 // pred_region
      _
    $region13: #{tpu_custom_call.1} parent=1 // pred_fallthru
      _
    // Predicated region
    $region14: #{tpu_custom_call.1} parent=1 // pred_check
      _
    $region15: #{tpu_custom_call.1} parent=1 // pred_check_branch
      %17 = sbr.rel (0) target = $region17
    $region16: #{tpu_custom_call.1} parent=1 // pred_region
      _
    $region17: #{tpu_custom_call.1} parent=1 // pred_fallthru
      _
    %v18 = vld [vmem:[%s1] sm:$0x1]
    %v19 = vunpack.c.l.bf16 %v18
    %v20 = vld [vmem:[%s2] sm:$0x1]
    %v21 = vunpack.c.0.s8 %v20
    %v22 = vcvt.s32.f32 %v21
    %v23 = vld [vmem:[%s3] sm:$0x1]
    %v24 = vunpack.c.0.s8 %v23
    %v25 = vcvt.s32.f32 %v24
    %v26 = vmax.f32 %v19, 0.0
    %v27 = vmul.f32 %v19, %v22
    %v28 = vsub.f32 %v26, %v27
    %v29 = vand.u32 2147483647, %v19
    %v30 = vsub.f32 0.0, %v29
    %v31 = vmul.f32 %v30, 1.442695
    %v32 = vpow.pop %v31
    %v33 = vadd.f32 %v32, 1.0
    %v34 = vlog2.pop %v33
    %v35 = vmul.f32 %v34, 0.6931472
    %v36 = vmul.f32 -0.5, %v32
    %v37 = vadd.f32 %v36, 1.0
    %v38 = vmul.f32 %v37, %v32
    %v39 = vand.u32 2147483647, %v32
    %vm40 = vcmp.lt.f32.partialorder %v39, 0.0004427343
    %v41 = vsel %vm40, %v38, %v35
    %v42 = vadd.f32 %v28, %v41
    %v43 = vmul.f32 %v42, %v25
    %v44 = vld [vmem:[%s0] sm:$0xff]
    %v45 = vld [vmem:[%s0 + $0x8] sm:$0xff]
    %v46 = vld [vmem:[%s0 + $0x10] sm:$0xff]
    %v47 = vld [vmem:[%s0 + $0x18] sm:$0xff]
    %v48 = vld [vmem:[%s0 + $0x20] sm:$0xff]
    %v49 = vld [vmem:[%s0 + $0x28] sm:$0xff]
    %v50 = vld [vmem:[%s0 + $0x30] sm:$0xff]
    %v51 = vld [vmem:[%s0 + $0x38] sm:$0xff]
    %v52 = vld [vmem:[%s0 + $0x40] sm:$0xff]
    %v53 = vld [vmem:[%s0 + $0x48] sm:$0xff]
    %v54 = vld [vmem:[%s0 + $0x50] sm:$0xff]
    %v55 = vld [vmem:[%s0 + $0x58] sm:$0xff]
    %v56 = vld [vmem:[%s0 + $0x60] sm:$0xff]
    %v57 = vld [vmem:[%s0 + $0x68] sm:$0xff]
    %v58 = vld [vmem:[%s0 + $0x70] sm:$0xff]
    %v59 = vld [vmem:[%s0 + $0x78] sm:$0xff]
    %60 = vmatprep.subr.mxu0 0.0
    %v61 = vand.u32 %v59, 4294901760
    %62 = vmatpush1.msra.mxu0 %v61
    %63 = vmatprep.subr.mxu0 0.0
    %v64 = vand.u32 %v58, 4294901760
    %65 = vmatpush1.msra.mxu0 %v64
    %66 = vmatprep.subr.mxu0 0.0
    %v67 = vand.u32 %v57, 4294901760
    %68 = vmatpush1.msra.mxu0 %v67
    %69 = vmatprep.subr.mxu0 0.0
    %v70 = vand.u32 %v56, 4294901760
    %71 = vmatpush1.msra.mxu0 %v70
    %72 = vmatprep.subr.mxu0 0.0
    %v73 = vand.u32 %v55, 4294901760
    %74 = vmatpush1.msra.mxu0 %v73
    %75 = vmatprep.subr.mxu0 0.0
    %v76 = vand.u32 %v54, 4294901760
    %77 = vmatpush1.msra.mxu0 %v76
    %78 = vmatprep.subr.mxu0 0.0
    %v79 = vand.u32 %v53, 4294901760
    %80 = vmatpush1.msra.mxu0 %v79
    %81 = vmatprep.subr.mxu0 0.0
    %v82 = vand.u32 %v52, 4294901760
    %83 = vmatpush1.msra.mxu0 %v82
    %84 = vmatprep.subr.mxu0 0.0
    %v85 = vand.u32 %v51, 4294901760
    %86 = vmatpush1.msra.mxu0 %v85
    %87 = vmatprep.subr.mxu0 0.0
    %v88 = vand.u32 %v50, 4294901760
    %89 = vmatpush1.msra.mxu0 %v88
    %90 = vmatprep.subr.mxu0 0.0
    %v91 = vand.u32 %v49, 4294901760
    %92 = vmatpush1.msra.mxu0 %v91
    %93 = vmatprep.subr.mxu0 0.0
    %v94 = vand.u32 %v48, 4294901760
    %95 = vmatpush1.msra.mxu0 %v94
    %96 = vmatprep.subr.mxu0 0.0
    %v97 = vand.u32 %v47, 4294901760
    %98 = vmatpush1.msra.mxu0 %v97
    %99 = vmatprep.subr.mxu0 0.0
    %v100 = vand.u32 %v46, 4294901760
    %101 = vmatpush1.msra.mxu0 %v100
    %102 = vmatprep.subr.mxu0 0.0
    %v103 = vand.u32 %v45, 4294901760
    %104 = vmatpush1.msra.mxu0 %v103
    %105 = vmatprep.subr.mxu0 0.0
    %v106 = vand.u32 %v44, 4294901760
    %107 = vmatpush1.msra.mxu0 %v106
    %108 = vmatprep.subr.mxu0 0.0
    %109 = vmatpush2.msra.mxu0 0.0
    %110 = vmatprep.subr.mxu0 0.0
    %111 = vmatpush2.msra.mxu0 0.0
    %112 = vmatprep.subr.mxu0 0.0
    %113 = vmatpush2.msra.mxu0 0.0
    %114 = vmatprep.subr.mxu0 0.0
    %115 = vmatpush2.msra.mxu0 0.0
    %116 = vmatprep.subr.mxu0 0.0
    %117 = vmatpush2.msra.mxu0 0.0
    %118 = vmatprep.subr.mxu0 0.0
    %119 = vmatpush2.msra.mxu0 0.0
    %120 = vmatprep.subr.mxu0 0.0
    %121 = vmatpush2.msra.mxu0 0.0
    %122 = vmatprep.subr.mxu0 0.0
    %123 = vmatpush2.msra.mxu0 0.0
    %124 = vmatprep.subr.mxu0 0.0
    %125 = vmatpush2.msra.mxu0 0.0
    %126 = vmatprep.subr.mxu0 0.0
    %127 = vmatpush2.msra.mxu0 0.0
    %128 = vmatprep.subr.mxu0 0.0
    %129 = vmatpush2.msra.mxu0 0.0
    %130 = vmatprep.subr.mxu0 0.0
    %131 = vmatpush2.msra.mxu0 0.0
    %132 = vmatprep.subr.mxu0 0.0
    %133 = vmatpush2.msra.mxu0 0.0
    %134 = vmatprep.subr.mxu0 0.0
    %135 = vmatpush2.msra.mxu0 0.0
    %136 = vmatprep.subr.mxu0 0.0
    %137 = vmatpush2.msra.mxu0 0.0
    %138 = vmatprep.subr.mxu0 0.0
    %139 = vmatpush2.msra.mxu0 0.0
    %140 = vmatprep.mubr.f32.mxu0 0.0
    %v141 = vand.u32 %v43, 4294901760
    %v142 = vsub.f32 %v43, %v141
    %v143 = vand.u32 %v142, 4294901760
    %v144 = vsub.f32 %v142, %v143
    %v145 = vand.u32 %v144, 4294901760
    %146 = vmatmul.mubr.f32.gmra.mxu0 %v145
    %v147 = vpop.f32.mrf.mxu0
    %v148 = vadd.f32 0.0, %v147
    %v149 = vpop.f32.mrf.mxu0
    %150 = vdwg.mxu0
    %151 = vmatprep.subr.mxu0 0.0
    %v152 = vand.u32 %v59, 4294901760
    %v153 = vsub.f32 %v59, %v152
    %v154 = vand.u32 %v153, 4294901760
    %v155 = vsub.f32 %v153, %v154
    %v156 = vand.u32 %v155, 4294901760
    %157 = vmatpush1.msra.mxu0 %v156
    %158 = vmatprep.subr.mxu0 0.0
    %v159 = vand.u32 %v58, 4294901760
    %v160 = vsub.f32 %v58, %v159
    %v161 = vand.u32 %v160, 4294901760
    %v162 = vsub.f32 %v160, %v161
    %v163 = vand.u32 %v162, 4294901760
    %164 = vmatpush1.msra.mxu0 %v163
    %165 = vmatprep.subr.mxu0 0.0
    %v166 = vand.u32 %v57, 4294901760
    %v167 = vsub.f32 %v57, %v166
    %v168 = vand.u32 %v167, 4294901760
    %v169 = vsub.f32 %v167, %v168
    %v170 = vand.u32 %v169, 4294901760
    %171 = vmatpush1.msra.mxu0 %v170
    %172 = vmatprep.subr.mxu0 0.0
    %v173 = vand.u32 %v56, 4294901760
    %v174 = vsub.f32 %v56, %v173
    %v175 = vand.u32 %v174, 4294901760
    %v176 = vsub.f32 %v174, %v175
    %v177 = vand.u32 %v176, 4294901760
    %178 = vmatpush1.msra.mxu0 %v177
    %179 = vmatprep.subr.mxu0 0.0
    %v180 = vand.u32 %v55, 4294901760
    %v181 = vsub.f32 %v55, %v180
    %v182 = vand.u32 %v181, 4294901760
    %v183 = vsub.f32 %v181, %v182
    %v184 = vand.u32 %v183, 4294901760
    %185 = vmatpush1.msra.mxu0 %v184
    %186 = vmatprep.subr.mxu0 0.0
    %v187 = vand.u32 %v54, 4294901760
    %v188 = vsub.f32 %v54, %v187
    %v189 = vand.u32 %v188, 4294901760
    %v190 = vsub.f32 %v188, %v189
    %v191 = vand.u32 %v190, 4294901760
    %192 = vmatpush1.msra.mxu0 %v191
    %193 = vmatprep.subr.mxu0 0.0
    %v194 = vand.u32 %v53, 4294901760
    %v195 = vsub.f32 %v53, %v194
    %v196 = vand.u32 %v195, 4294901760
    %v197 = vsub.f32 %v195, %v196
    %v198 = vand.u32 %v197, 4294901760
    %199 = vmatpush1.msra.mxu0 %v198
    %200 = vmatprep.subr.mxu0 0.0
    %v201 = vand.u32 %v52, 4294901760
    %v202 = vsub.f32 %v52, %v201
    %v203 = vand.u32 %v202, 4294901760
    %v204 = vsub.f32 %v202, %v203
    %v205 = vand.u32 %v204, 4294901760
    %206 = vmatpush1.msra.mxu0 %v205
    %207 = vmatprep.subr.mxu0 0.0
    %v208 = vand.u32 %v51, 4294901760
    %v209 = vsub.f32 %v51, %v208
    %v210 = vand.u32 %v209, 4294901760
    %v211 = vsub.f32 %v209, %v210
    %v212 = vand.u32 %v211, 4294901760
    %213 = vmatpush1.msra.mxu0 %v212
    %214 = vmatprep.subr.mxu0 0.0
    %v215 = vand.u32 %v50, 4294901760
    %v216 = vsub.f32 %v50, %v215
    %v217 = vand.u32 %v216, 4294901760
    %v218 = vsub.f32 %v216, %v217
    %v219 = vand.u32 %v218, 4294901760
    %220 = vmatpush1.msra.mxu0 %v219
    %221 = vmatprep.subr.mxu0 0.0
    %v222 = vand.u32 %v49, 4294901760
    %v223 = vsub.f32 %v49, %v222
    %v224 = vand.u32 %v223, 4294901760
    %v225 = vsub.f32 %v223, %v224
    %v226 = vand.u32 %v225, 4294901760
    %227 = vmatpush1.msra.mxu0 %v226
    %228 = vmatprep.subr.mxu0 0.0
    %v229 = vand.u32 %v48, 4294901760
    %v230 = vsub.f32 %v48, %v229
    %v231 = vand.u32 %v230, 4294901760
    %v232 = vsub.f32 %v230, %v231
    %v233 = vand.u32 %v232, 4294901760
    %234 = vmatpush1.msra.mxu0 %v233
    %235 = vmatprep.subr.mxu0 0.0
    %v236 = vand.u32 %v47, 4294901760
    %v237 = vsub.f32 %v47, %v236
    %v238 = vand.u32 %v237, 4294901760
    %v239 = vsub.f32 %v237, %v238
    %v240 = vand.u32 %v239, 4294901760
    %241 = vmatpush1.msra.mxu0 %v240
    %242 = vmatprep.subr.mxu0 0.0
    %v243 = vand.u32 %v46, 4294901760
    %v244 = vsub.f32 %v46, %v243
    %v245 = vand.u32 %v244, 4294901760
    %v246 = vsub.f32 %v244, %v245
    %v247 = vand.u32 %v246, 4294901760
    %248 = vmatpush1.msra.mxu0 %v247
    %249 = vmatprep.subr.mxu0 0.0
    %v250 = vand.u32 %v45, 4294901760
    %v251 = vsub.f32 %v45, %v250
    %v252 = vand.u32 %v251, 4294901760
    %v253 = vsub.f32 %v251, %v252
    %v254 = vand.u32 %v253, 4294901760
    %255 = vmatpush1.msra.mxu0 %v254
    %256 = vmatprep.subr.mxu0 0.0
    %v257 = vand.u32 %v44, 4294901760
    %v258 = vsub.f32 %v44, %v257
    %v259 = vand.u32 %v258, 4294901760
    %v260 = vsub.f32 %v258, %v259
    %v261 = vand.u32 %v260, 4294901760
    %262 = vmatpush1.msra.mxu0 %v261
    %263 = vmatprep.subr.mxu0 0.0
    %264 = vmatpush2.msra.mxu0 0.0
    %265 = vmatprep.subr.mxu0 0.0
    %266 = vmatpush2.msra.mxu0 0.0
    %267 = vmatprep.subr.mxu0 0.0
    %268 = vmatpush2.msra.mxu0 0.0
    %269 = vmatprep.subr.mxu0 0.0
    %270 = vmatpush2.msra.mxu0 0.0
    %271 = vmatprep.subr.mxu0 0.0
    %272 = vmatpush2.msra.mxu0 0.0
    %273 = vmatprep.subr.mxu0 0.0
    %274 = vmatpush2.msra.mxu0 0.0
    %275 = vmatprep.subr.mxu0 0.0
    %276 = vmatpush2.msra.mxu0 0.0
    %277 = vmatprep.subr.mxu0 0.0
    %278 = vmatpush2.msra.mxu0 0.0
    %279 = vmatprep.subr.mxu0 0.0
    %280 = vmatpush2.msra.mxu0 0.0
    %281 = vmatprep.subr.mxu0 0.0
    %282 = vmatpush2.msra.mxu0 0.0
    %283 = vmatprep.subr.mxu0 0.0
    %284 = vmatpush2.msra.mxu0 0.0
    %285 = vmatprep.subr.mxu0 0.0
    %286 = vmatpush2.msra.mxu0 0.0
    %287 = vmatprep.subr.mxu0 0.0
    %288 = vmatpush2.msra.mxu0 0.0
    %289 = vmatprep.subr.mxu0 0.0
    %290 = vmatpush2.msra.mxu0 0.0
    %291 = vmatprep.subr.mxu0 0.0
    %292 = vmatpush2.msra.mxu0 0.0
    %293 = vmatprep.subr.mxu0 0.0
    %294 = vmatpush2.msra.mxu0 0.0
    %295 = vmatprep.mubr.f32.mxu0 0.0
    %v296 = vand.u32 %v43, 4294901760
    %297 = vmatmul.mubr.f32.gmra.mxu0 %v296
    %v298 = vpop.f32.mrf.mxu0
    %v299 = vadd.f32 %v148, %v298
    %v300 = vpop.f32.mrf.mxu0
    %301 = vdwg.mxu0
    %302 = vmatprep.subr.mxu0 0.0
    %v303 = vand.u32 %v59, 4294901760
    %v304 = vsub.f32 %v59, %v303
    %305 = vmatpush1.msra.mxu0 %v304
    %306 = vmatprep.subr.mxu0 0.0
    %v307 = vand.u32 %v58, 4294901760
    %v308 = vsub.f32 %v58, %v307
    %309 = vmatpush1.msra.mxu0 %v308
    %310 = vmatprep.subr.mxu0 0.0
    %v311 = vand.u32 %v57, 4294901760
    %v312 = vsub.f32 %v57, %v311
    %313 = vmatpush1.msra.mxu0 %v312
    %314 = vmatprep.subr.mxu0 0.0
    %v315 = vand.u32 %v56, 4294901760
    %v316 = vsub.f32 %v56, %v315
    %317 = vmatpush1.msra.mxu0 %v316
    %318 = vmatprep.subr.mxu0 0.0
    %v319 = vand.u32 %v55, 4294901760
    %v320 = vsub.f32 %v55, %v319
    %321 = vmatpush1.msra.mxu0 %v320
    %322 = vmatprep.subr.mxu0 0.0
    %v323 = vand.u32 %v54, 4294901760
    %v324 = vsub.f32 %v54, %v323
    %325 = vmatpush1.msra.mxu0 %v324
    %326 = vmatprep.subr.mxu0 0.0
    %v327 = vand.u32 %v53, 4294901760
    %v328 = vsub.f32 %v53, %v327
    %329 = vmatpush1.msra.mxu0 %v328
    %330 = vmatprep.subr.mxu0 0.0
    %v331 = vand.u32 %v52, 4294901760
    %v332 = vsub.f32 %v52, %v331
    %333 = vmatpush1.msra.mxu0 %v332
    %334 = vmatprep.subr.mxu0 0.0
    %v335 = vand.u32 %v51, 4294901760
    %v336 = vsub.f32 %v51, %v335
    %337 = vmatpush1.msra.mxu0 %v336
    %338 = vmatprep.subr.mxu0 0.0
    %v339 = vand.u32 %v50, 4294901760
    %v340 = vsub.f32 %v50, %v339
    %341 = vmatpush1.msra.mxu0 %v340
    %342 = vmatprep.subr.mxu0 0.0
    %v343 = vand.u32 %v49, 4294901760
    %v344 = vsub.f32 %v49, %v343
    %345 = vmatpush1.msra.mxu0 %v344
    %346 = vmatprep.subr.mxu0 0.0
    %v347 = vand.u32 %v48, 4294901760
    %v348 = vsub.f32 %v48, %v347
    %349 = vmatpush1.msra.mxu0 %v348
    %350 = vmatprep.subr.mxu0 0.0
    %v351 = vand.u32 %v47, 4294901760
    %v352 = vsub.f32 %v47, %v351
    %353 = vmatpush1.msra.mxu0 %v352
    %354 = vmatprep.subr.mxu0 0.0
    %v355 = vand.u32 %v46, 4294901760
    %v356 = vsub.f32 %v46, %v355
    %357 = vmatpush1.msra.mxu0 %v356
    %358 = vmatprep.subr.mxu0 0.0
    %v359 = vand.u32 %v45, 4294901760
    %v360 = vsub.f32 %v45, %v359
    %361 = vmatpush1.msra.mxu0 %v360
    %362 = vmatprep.subr.mxu0 0.0
    %v363 = vand.u32 %v44, 4294901760
    %v364 = vsub.f32 %v44, %v363
    %365 = vmatpush1.msra.mxu0 %v364
    %366 = vmatprep.subr.mxu0 0.0
    %367 = vmatpush2.msra.mxu0 0.0
    %368 = vmatprep.subr.mxu0 0.0
    %369 = vmatpush2.msra.mxu0 0.0
    %370 = vmatprep.subr.mxu0 0.0
    %371 = vmatpush2.msra.mxu0 0.0
    %372 = vmatprep.subr.mxu0 0.0
    %373 = vmatpush2.msra.mxu0 0.0
    %374 = vmatprep.subr.mxu0 0.0
    %375 = vmatpush2.msra.mxu0 0.0
    %376 = vmatprep.subr.mxu0 0.0
    %377 = vmatpush2.msra.mxu0 0.0
    %378 = vmatprep.subr.mxu0 0.0
    %379 = vmatpush2.msra.mxu0 0.0
    %380 = vmatprep.subr.mxu0 0.0
    %381 = vmatpush2.msra.mxu0 0.0
    %382 = vmatprep.subr.mxu0 0.0
    %383 = vmatpush2.msra.mxu0 0.0
    %384 = vmatprep.subr.mxu0 0.0
    %385 = vmatpush2.msra.mxu0 0.0
    %386 = vmatprep.subr.mxu0 0.0
    %387 = vmatpush2.msra.mxu0 0.0
    %388 = vmatprep.subr.mxu0 0.0
    %389 = vmatpush2.msra.mxu0 0.0
    %390 = vmatprep.subr.mxu0 0.0
    %391 = vmatpush2.msra.mxu0 0.0
    %392 = vmatprep.subr.mxu0 0.0
    %393 = vmatpush2.msra.mxu0 0.0
    %394 = vmatprep.subr.mxu0 0.0
    %395 = vmatpush2.msra.mxu0 0.0
    %396 = vmatprep.subr.mxu0 0.0
    %397 = vmatpush2.msra.mxu0 0.0
    %398 = vmatprep.mubr.f32.mxu0 0.0
    %v399 = vand.u32 %v43, 4294901760
    %v400 = vsub.f32 %v43, %v399
    %401 = vmatmul.mubr.f32.gmra.mxu0 %v400
    %v402 = vpop.f32.mrf.mxu0
    %v403 = vadd.f32 %v299, %v402
    %v404 = vpop.f32.mrf.mxu0
    %405 = vdwg.mxu0
    %406 = vmatprep.subr.mxu0 0.0
    %v407 = vand.u32 %v59, 4294901760
    %408 = vmatpush1.msra.mxu0 %v407
    %409 = vmatprep.subr.mxu0 0.0
    %v410 = vand.u32 %v58, 4294901760
    %411 = vmatpush1.msra.mxu0 %v410
    %412 = vmatprep.subr.mxu0 0.0
    %v413 = vand.u32 %v57, 4294901760
    %414 = vmatpush1.msra.mxu0 %v413
    %415 = vmatprep.subr.mxu0 0.0
    %v416 = vand.u32 %v56, 4294901760
    %417 = vmatpush1.msra.mxu0 %v416
    %418 = vmatprep.subr.mxu0 0.0
    %v419 = vand.u32 %v55, 4294901760
    %420 = vmatpush1.msra.mxu0 %v419
    %421 = vmatprep.subr.mxu0 0.0
    %v422 = vand.u32 %v54, 4294901760
    %423 = vmatpush1.msra.mxu0 %v422
    %424 = vmatprep.subr.mxu0 0.0
    %v425 = vand.u32 %v53, 4294901760
    %426 = vmatpush1.msra.mxu0 %v425
    %427 = vmatprep.subr.mxu0 0.0
    %v428 = vand.u32 %v52, 4294901760
    %429 = vmatpush1.msra.mxu0 %v428
    %430 = vmatprep.subr.mxu0 0.0
    %v431 = vand.u32 %v51, 4294901760
    %432 = vmatpush1.msra.mxu0 %v431
    %433 = vmatprep.subr.mxu0 0.0
    %v434 = vand.u32 %v50, 4294901760
    %435 = vmatpush1.msra.mxu0 %v434
    %436 = vmatprep.subr.mxu0 0.0
    %v437 = vand.u32 %v49, 4294901760
    %438 = vmatpush1.msra.mxu0 %v437
    %439 = vmatprep.subr.mxu0 0.0
    %v440 = vand.u32 %v48, 4294901760
    %441 = vmatpush1.msra.mxu0 %v440
    %442 = vmatprep.subr.mxu0 0.0
    %v443 = vand.u32 %v47, 4294901760
    %444 = vmatpush1.msra.mxu0 %v443
    %445 = vmatprep.subr.mxu0 0.0
    %v446 = vand.u32 %v46, 4294901760
    %447 = vmatpush1.msra.mxu0 %v446
    %448 = vmatprep.subr.mxu0 0.0
    %v449 = vand.u32 %v45, 4294901760
    %450 = vmatpush1.msra.mxu0 %v449
    %451 = vmatprep.subr.mxu0 0.0
    %v452 = vand.u32 %v44, 4294901760
    %453 = vmatpush1.msra.mxu0 %v452
    %454 = vmatprep.subr.mxu0 0.0
    %455 = vmatpush2.msra.mxu0 0.0
    %456 = vmatprep.subr.mxu0 0.0
    %457 = vmatpush2.msra.mxu0 0.0
    %458 = vmatprep.subr.mxu0 0.0
    %459 = vmatpush2.msra.mxu0 0.0
    %460 = vmatprep.subr.mxu0 0.0
    %461 = vmatpush2.msra.mxu0 0.0
    %462 = vmatprep.subr.mxu0 0.0
    %463 = vmatpush2.msra.mxu0 0.0
    %464 = vmatprep.subr.mxu0 0.0
    %465 = vmatpush2.msra.mxu0 0.0
    %466 = vmatprep.subr.mxu0 0.0
    %467 = vmatpush2.msra.mxu0 0.0
    %468 = vmatprep.subr.mxu0 0.0
    %469 = vmatpush2.msra.mxu0 0.0
    %470 = vmatprep.subr.mxu0 0.0
    %471 = vmatpush2.msra.mxu0 0.0
    %472 = vmatprep.subr.mxu0 0.0
    %473 = vmatpush2.msra.mxu0 0.0
    %474 = vmatprep.subr.mxu0 0.0
    %475 = vmatpush2.msra.mxu0 0.0
    %476 = vmatprep.subr.mxu0 0.0
    %477 = vmatpush2.msra.mxu0 0.0
    %478 = vmatprep.subr.mxu0 0.0
    %479 = vmatpush2.msra.mxu0 0.0
    %480 = vmatprep.subr.mxu0 0.0
    %481 = vmatpush2.msra.mxu0 0.0
    %482 = vmatprep.subr.mxu0 0.0
    %483 = vmatpush2.msra.mxu0 0.0
    %484 = vmatprep.subr.mxu0 0.0
    %485 = vmatpush2.msra.mxu0 0.0
    %486 = vmatprep.mubr.f32.mxu0 0.0
    %v487 = vand.u32 %v43, 4294901760
    %v488 = vsub.f32 %v43, %v487
    %v489 = vand.u32 %v488, 4294901760
    %490 = vmatmul.mubr.f32.gmra.mxu0 %v489
    %v491 = vpop.f32.mrf.mxu0
    %v492 = vadd.f32 %v403, %v491
    %v493 = vpop.f32.mrf.mxu0
    %494 = vdwg.mxu0
    %495 = vmatprep.subr.mxu0 0.0
    %v496 = vand.u32 %v59, 4294901760
    %v497 = vsub.f32 %v59, %v496
    %v498 = vand.u32 %v497, 4294901760
    %499 = vmatpush1.msra.mxu0 %v498
    %500 = vmatprep.subr.mxu0 0.0
    %v501 = vand.u32 %v58, 4294901760
    %v502 = vsub.f32 %v58, %v501
    %v503 = vand.u32 %v502, 4294901760
    %504 = vmatpush1.msra.mxu0 %v503
    %505 = vmatprep.subr.mxu0 0.0
    %v506 = vand.u32 %v57, 4294901760
    %v507 = vsub.f32 %v57, %v506
    %v508 = vand.u32 %v507, 4294901760
    %509 = vmatpush1.msra.mxu0 %v508
    %510 = vmatprep.subr.mxu0 0.0
    %v511 = vand.u32 %v56, 4294901760
    %v512 = vsub.f32 %v56, %v511
    %v513 = vand.u32 %v512, 4294901760
    %514 = vmatpush1.msra.mxu0 %v513
    %515 = vmatprep.subr.mxu0 0.0
    %v516 = vand.u32 %v55, 4294901760
    %v517 = vsub.f32 %v55, %v516
    %v518 = vand.u32 %v517, 4294901760
    %519 = vmatpush1.msra.mxu0 %v518
    %520 = vmatprep.subr.mxu0 0.0
    %v521 = vand.u32 %v54, 4294901760
    %v522 = vsub.f32 %v54, %v521
    %v523 = vand.u32 %v522, 4294901760
    %524 = vmatpush1.msra.mxu0 %v523
    %525 = vmatprep.subr.mxu0 0.0
    %v526 = vand.u32 %v53, 4294901760
    %v527 = vsub.f32 %v53, %v526
    %v528 = vand.u32 %v527, 4294901760
    %529 = vmatpush1.msra.mxu0 %v528
    %530 = vmatprep.subr.mxu0 0.0
    %v531 = vand.u32 %v52, 4294901760
    %v532 = vsub.f32 %v52, %v531
    %v533 = vand.u32 %v532, 4294901760
    %534 = vmatpush1.msra.mxu0 %v533
    %535 = vmatprep.subr.mxu0 0.0
    %v536 = vand.u32 %v51, 4294901760
    %v537 = vsub.f32 %v51, %v536
    %v538 = vand.u32 %v537, 4294901760
    %539 = vmatpush1.msra.mxu0 %v538
    %540 = vmatprep.subr.mxu0 0.0
    %v541 = vand.u32 %v50, 4294901760
    %v542 = vsub.f32 %v50, %v541
    %v543 = vand.u32 %v542, 4294901760
    %544 = vmatpush1.msra.mxu0 %v543
    %545 = vmatprep.subr.mxu0 0.0
    %v546 = vand.u32 %v49, 4294901760
    %v547 = vsub.f32 %v49, %v546
    %v548 = vand.u32 %v547, 4294901760
    %549 = vmatpush1.msra.mxu0 %v548
    %550 = vmatprep.subr.mxu0 0.0
    %v551 = vand.u32 %v48, 4294901760
    %v552 = vsub.f32 %v48, %v551
    %v553 = vand.u32 %v552, 4294901760
    %554 = vmatpush1.msra.mxu0 %v553
    %555 = vmatprep.subr.mxu0 0.0
    %v556 = vand.u32 %v47, 4294901760
    %v557 = vsub.f32 %v47, %v556
    %v558 = vand.u32 %v557, 4294901760
    %559 = vmatpush1.msra.mxu0 %v558
    %560 = vmatprep.subr.mxu0 0.0
    %v561 = vand.u32 %v46, 4294901760
    %v562 = vsub.f32 %v46, %v561
    %v563 = vand.u32 %v562, 4294901760
    %564 = vmatpush1.msra.mxu0 %v563
    %565 = vmatprep.subr.mxu0 0.0
    %v566 = vand.u32 %v45, 4294901760
    %v567 = vsub.f32 %v45, %v566
    %v568 = vand.u32 %v567, 4294901760
    %569 = vmatpush1.msra.mxu0 %v568
    %570 = vmatprep.subr.mxu0 0.0
    %v571 = vand.u32 %v44, 4294901760
    %v572 = vsub.f32 %v44, %v571
    %v573 = vand.u32 %v572, 4294901760
    %574 = vmatpush1.msra.mxu0 %v573
    %575 = vmatprep.subr.mxu0 0.0
    %576 = vmatpush2.msra.mxu0 0.0
    %577 = vmatprep.subr.mxu0 0.0
    %578 = vmatpush2.msra.mxu0 0.0
    %579 = vmatprep.subr.mxu0 0.0
    %580 = vmatpush2.msra.mxu0 0.0
    %581 = vmatprep.subr.mxu0 0.0
    %582 = vmatpush2.msra.mxu0 0.0
    %583 = vmatprep.subr.mxu0 0.0
    %584 = vmatpush2.msra.mxu0 0.0
    %585 = vmatprep.subr.mxu0 0.0
    %586 = vmatpush2.msra.mxu0 0.0
    %587 = vmatprep.subr.mxu0 0.0
    %588 = vmatpush2.msra.mxu0 0.0
    %589 = vmatprep.subr.mxu0 0.0
    %590 = vmatpush2.msra.mxu0 0.0
    %591 = vmatprep.subr.mxu0 0.0
    %592 = vmatpush2.msra.mxu0 0.0
    %593 = vmatprep.subr.mxu0 0.0
    %594 = vmatpush2.msra.mxu0 0.0
    %595 = vmatprep.subr.mxu0 0.0
    %596 = vmatpush2.msra.mxu0 0.0
    %597 = vmatprep.subr.mxu0 0.0
    %598 = vmatpush2.msra.mxu0 0.0
    %599 = vmatprep.subr.mxu0 0.0
    %600 = vmatpush2.msra.mxu0 0.0
    %601 = vmatprep.subr.mxu0 0.0
    %602 = vmatpush2.msra.mxu0 0.0
    %603 = vmatprep.subr.mxu0 0.0
    %604 = vmatpush2.msra.mxu0 0.0
    %605 = vmatprep.subr.mxu0 0.0
    %606 = vmatpush2.msra.mxu0 0.0
    %607 = vmatprep.mubr.f32.mxu0 0.0
    %v608 = vand.u32 %v43, 4294901760
    %609 = vmatmul.mubr.f32.gmra.mxu0 %v608
    %v610 = vpop.f32.mrf.mxu0
    %v611 = vadd.f32 %v492, %v610
    %v612 = vpop.f32.mrf.mxu0
    %613 = vdwg.mxu0
    %614 = vmatprep.subr.mxu0 0.0
    %v615 = vand.u32 %v59, 4294901760
    %616 = vmatpush1.msra.mxu0 %v615
    %617 = vmatprep.subr.mxu0 0.0
    %v618 = vand.u32 %v58, 4294901760
    %619 = vmatpush1.msra.mxu0 %v618
    %620 = vmatprep.subr.mxu0 0.0
    %v621 = vand.u32 %v57, 4294901760
    %622 = vmatpush1.msra.mxu0 %v621
    %623 = vmatprep.subr.mxu0 0.0
    %v624 = vand.u32 %v56, 4294901760
    %625 = vmatpush1.msra.mxu0 %v624
    %626 = vmatprep.subr.mxu0 0.0
    %v627 = vand.u32 %v55, 4294901760
    %628 = vmatpush1.msra.mxu0 %v627
    %629 = vmatprep.subr.mxu0 0.0
    %v630 = vand.u32 %v54, 4294901760
    %631 = vmatpush1.msra.mxu0 %v630
    %632 = vmatprep.subr.mxu0 0.0
    %v633 = vand.u32 %v53, 4294901760
    %634 = vmatpush1.msra.mxu0 %v633
    %635 = vmatprep.subr.mxu0 0.0
    %v636 = vand.u32 %v52, 4294901760
    %637 = vmatpush1.msra.mxu0 %v636
    %638 = vmatprep.subr.mxu0 0.0
    %v639 = vand.u32 %v51, 4294901760
    %640 = vmatpush1.msra.mxu0 %v639
    %641 = vmatprep.subr.mxu0 0.0
    %v642 = vand.u32 %v50, 4294901760
    %643 = vmatpush1.msra.mxu0 %v642
    %644 = vmatprep.subr.mxu0 0.0
    %v645 = vand.u32 %v49, 4294901760
    %646 = vmatpush1.msra.mxu0 %v645
    %647 = vmatprep.subr.mxu0 0.0
    %v648 = vand.u32 %v48, 4294901760
    %649 = vmatpush1.msra.mxu0 %v648
    %650 = vmatprep.subr.mxu0 0.0
    %v651 = vand.u32 %v47, 4294901760
    %652 = vmatpush1.msra.mxu0 %v651
    %653 = vmatprep.subr.mxu0 0.0
    %v654 = vand.u32 %v46, 4294901760
    %655 = vmatpush1.msra.mxu0 %v654
    %656 = vmatprep.subr.mxu0 0.0
    %v657 = vand.u32 %v45, 4294901760
    %658 = vmatpush1.msra.mxu0 %v657
    %659 = vmatprep.subr.mxu0 0.0
    %v660 = vand.u32 %v44, 4294901760
    %661 = vmatpush1.msra.mxu0 %v660
    %662 = vmatprep.subr.mxu0 0.0
    %663 = vmatpush2.msra.mxu0 0.0
    %664 = vmatprep.subr.mxu0 0.0
    %665 = vmatpush2.msra.mxu0 0.0
    %666 = vmatprep.subr.mxu0 0.0
    %667 = vmatpush2.msra.mxu0 0.0
    %668 = vmatprep.subr.mxu0 0.0
    %669 = vmatpush2.msra.mxu0 0.0
    %670 = vmatprep.subr.mxu0 0.0
    %671 = vmatpush2.msra.mxu0 0.0
    %672 = vmatprep.subr.mxu0 0.0
    %673 = vmatpush2.msra.mxu0 0.0
    %674 = vmatprep.subr.mxu0 0.0
    %675 = vmatpush2.msra.mxu0 0.0
    %676 = vmatprep.subr.mxu0 0.0
    %677 = vmatpush2.msra.mxu0 0.0
    %678 = vmatprep.subr.mxu0 0.0
    %679 = vmatpush2.msra.mxu0 0.0
    %680 = vmatprep.subr.mxu0 0.0
    %681 = vmatpush2.msra.mxu0 0.0
    %682 = vmatprep.subr.mxu0 0.0
    %683 = vmatpush2.msra.mxu0 0.0
    %684 = vmatprep.subr.mxu0 0.0
    %685 = vmatpush2.msra.mxu0 0.0
    %686 = vmatprep.subr.mxu0 0.0
    %687 = vmatpush2.msra.mxu0 0.0
    %688 = vmatprep.subr.mxu0 0.0
    %689 = vmatpush2.msra.mxu0 0.0
    %690 = vmatprep.subr.mxu0 0.0
    %691 = vmatpush2.msra.mxu0 0.0
    %692 = vmatprep.subr.mxu0 0.0
    %693 = vmatpush2.msra.mxu0 0.0
    %694 = vmatprep.mubr.f32.mxu0 0.0
    %v695 = vand.u32 %v43, 4294901760
    %696 = vmatmul.mubr.f32.gmra.mxu0 %v695
    %v697 = vpop.f32.mrf.mxu0
    %v698 = vadd.f32 %v611, %v697
    %v699 = vpop.f32.mrf.mxu0
    %700 = vdwg.mxu0
    %vm701 = vcmask 253952
    %702 = vst.msk [vmem:[#allocation2] sm:$0x1] %vm701, %v698
    // Predicated region
    $region18: #{tpu_custom_call.1} parent=1 // pred_check
      _
    $region19: #{tpu_custom_call.1} parent=1 // pred_check_branch
      %704 = sbr.rel (0) target = $region21
    $region20: #{tpu_custom_call.1} parent=1 // pred_region
      %s706 = ssub.s32 16, 16
      %707 = vsyncadd [#allocation3], %s706
      %s709 = sshll.u32 [#allocation2], 4
      %s710 = int_to_ptr.vmem [resolvable:$true] %s709
      %712 = dma.vmem_to_hbm [thread:$0]  %s710, 16, %s4, [#allocation3]
    $region21: #{tpu_custom_call.1} parent=1 // pred_fallthru
      _
    // Predicated region
    $region22: #{tpu_custom_call.1} parent=1 // pred_check
      _
    $region23: #{tpu_custom_call.1} parent=1 // pred_check_branch
      %714 = sbr.rel (0) target = $region25
    $region24: #{tpu_custom_call.1} parent=1 // pred_region
      %715 = dma.done [#allocation3], 16
    $region25: #{tpu_custom_call.1} parent=1 // pred_fallthru
      _
    %716 = vsyncpa [#allocation3], 1

</llo_original>
